<compile_context>
chip_gen: v6e
topology: v6e:2x2x1
jax: 0.10.0
libtpu: 0.0.40
codegen_flags: <defaults>
</compile_context>

<pallas_src>
import jax
import jax.numpy as jnp
from jax.experimental import pallas as pl
from jax.experimental.pallas import tpu as pltpu


def _posenc_kernel(x_ref, o_ref):
    """One batch tile.

    x_ref: VMEM (TB, D)       input tile
    o_ref: VMEM (TB, 2*L*D)   output tile in torch flatten order:
           o[:, :L*D] = sin slabs, o[:, L*D:] = cos slabs
    """
    x = x_ref[...]                       # (TB, D)
    d = x.shape[-1]                      # D     (static)
    ld = o_ref.shape[-1] // 2            # L*D   (static)
    reps = ld // d                       # L     (static)

    # wx slab in torch block order: block j = 2^j * x.  2^j is an exact f32
    # compile-time splat constant (VPU multiply), so no weight array, no HBM
    # input and no extra DMA/double buffer.
    wx = jnp.concatenate(
        [x * jnp.float32(2.0 ** jj) for jj in range(reps)], axis=-1
    )                                    # (TB, L*D)

    # sin/cos on the EUP, then ONE dense (TB, 2*L*D) store.  Concatenating the
    # two slabs keeps the store unmasked even when L*D % 128 != 0.
    o_ref[...] = jnp.concatenate([jnp.sin(wx), jnp.cos(wx)], axis=-1)


def _round_up(v, m):
    return ((v + m - 1) // m) * m


def positional_encoding(x, l, *, block_b=None):
    """x: (B, D) float32 -> (B, 2*l*D) float32, matching the torch module."""
    B, D = x.shape
    out_w = 2 * l * D
    itemsize = x.dtype.itemsize

    # ---- batch-tile (TB) selection -----------------------------------------
    if block_b is not None:
        tb = max(8, (block_b // 8) * 8)            # sublane-align user tile
    else:
        # Byte-based: ~2 MiB of output per grid step amortizes the ~0.35 us
        # per-step overhead and keeps the stores streaming at HBM roofline.
        tb_target = max(8, ((2 << 20) // (out_w * itemsize)) // 8 * 8)
        # VMEM cap: double-buffered input (2*D) + double-buffered output
        # (2*out_w) + wx/sin/cos temporaries (~2*out_w) per row; keep the total
        # <= ~12 MiB so it fits the smallest scoped-VMEM default (v5e 16 MiB).
        per_row_vmem = itemsize * (2 * D + 4 * out_w)
        tb_vmem = max(8, ((12 << 20) // per_row_vmem) // 8 * 8)
        tb = min(tb_target, tb_vmem)

    # Megacore (v7x, 2 TCs): ensure the "parallel" batch axis has >= 2 grid
    # steps whenever there is enough batch to split.
    if B > 8:
        tb = min(tb, _round_up(pl.cdiv(B, 2), 8))

    # Tiny batches: one full-height block (block dim == full array dim is a
    # legal block shape even when B is not a multiple of 8).
    if B <= tb:
        tb = B

    # Ragged final block (B % tb != 0) is masked on store by Pallas — no pad
    # of x and no out[:B] slice, so no extra HBM round trip.
    grid = (pl.cdiv(B, tb),)

    cost = pl.CostEstimate(
        flops=2 * B * l * D,               # per-block scale + slab assembly
        transcendentals=2 * B * l * D,     # sin + cos per element
        bytes_accessed=(B * D + B * out_w) * itemsize,
    )

    return pl.pallas_call(
        _posenc_kernel,
        out_shape=jax.ShapeDtypeStruct((B, out_w), x.dtype),
        grid=grid,
        in_specs=[pl.BlockSpec((tb, D), lambda i: (i, 0))],
        out_specs=pl.BlockSpec((tb, out_w), lambda i: (i, 0)),
        compiler_params=pltpu.CompilerParams(
            dimension_semantics=("parallel",),     # batch rows are independent
        ),
        cost_estimate=cost,
    )(x)


def _reference(x, l):
    w = (2.0 ** jnp.arange(l)).astype(jnp.float32).reshape(1, l, 1)
    wx = w * x[:, None, :]
    return jnp.concatenate([jnp.sin(wx), jnp.cos(wx)], axis=1).reshape(
        x.shape[0], 2 * l * x.shape[1]
    )


if __name__ == "__main__":
    D, L = 16, 4

    # Small demo shape (single full-height block, grid=(1,)).
    B = 2
    x = jax.random.normal(jax.random.PRNGKey(0), (B, D), dtype=jnp.float32)
    out = jax.block_until_ready(positional_encoding(x, L))
    ref = _reference(x, L)
    assert out.shape == (B, 2 * L * D), out.shape
    assert jnp.allclose(out, ref, atol=1e-5, rtol=1e-5)

    # Auto-sized path: megacore split (tb capped to ~B/2) + ragged last block.
    B2 = 40
    x2 = jax.random.normal(jax.random.PRNGKey(1), (B2, D), dtype=jnp.float32)
    out2 = jax.block_until_ready(positional_encoding(x2, L))
    ref2 = _reference(x2, L)
    assert out2.shape == (B2, 2 * L * D), out2.shape
    assert jnp.allclose(out2, ref2, atol=1e-5, rtol=1e-5)

    # Explicit block_b: multi-step grid with a ragged last block (no pad/slice).
    B3 = 520
    x3 = jax.random.normal(jax.random.PRNGKey(2), (B3, D), dtype=jnp.float32)
    out3 = jax.block_until_ready(positional_encoding(x3, L, block_b=256))
    ref3 = _reference(x3, L)
    assert out3.shape == (B3, 2 * L * D), out3.shape
    assert jnp.allclose(out3, ref3, atol=1e-5, rtol=1e-5)

    print("KERNEL_OK")
</pallas_src>

<mosaic_0001>
module attributes {stable_mosaic.version = 11 : i64} {
  func.func @_posenc_kernel(%arg0: i32, %arg1: memref<2x16xf32, #tpu.memory_space<vmem>>, %arg2: memref<2x128xf32, #tpu.memory_space<vmem>>) attributes {dimension_semantics = [#tpu.dimension_semantics<parallel>], iteration_bounds = array<i64: 1>, scalar_prefetch = 0 : i64, scratch_operands = 0 : i64, tpu.core_type = #tpu.core_type<tc>, window_params = [{transform_indices = @transform_0, window_bounds = array<i64: 2, 16>}, {transform_indices = @transform_1, window_bounds = array<i64: 2, 128>}]} {
    %c0 = arith.constant 0 : index
    %c0_0 = arith.constant 0 : index
    %0 = vector.load %arg1[%c0, %c0_0] : memref<2x16xf32, #tpu.memory_space<vmem>>, vector<2x16xf32>
    %cst = arith.constant 1.000000e+00 : f32
    %1 = vector.broadcast %cst : f32 to vector<2x16xf32>
    %2 = arith.mulf %0, %1 : vector<2x16xf32>
    %cst_1 = arith.constant 2.000000e+00 : f32
    %3 = vector.broadcast %cst_1 : f32 to vector<2x16xf32>
    %4 = arith.mulf %0, %3 : vector<2x16xf32>
    %cst_2 = arith.constant 4.000000e+00 : f32
    %5 = vector.broadcast %cst_2 : f32 to vector<2x16xf32>
    %6 = arith.mulf %0, %5 : vector<2x16xf32>
    %cst_3 = arith.constant 8.000000e+00 : f32
    %7 = vector.broadcast %cst_3 : f32 to vector<2x16xf32>
    %8 = arith.mulf %0, %7 : vector<2x16xf32>
    %9 = tpu.concatenate %2, %4, %6, %8 in 1 : vector<2x16xf32>, vector<2x16xf32>, vector<2x16xf32>, vector<2x16xf32> -> vector<2x64xf32>
    %10 = math.sin %9 : vector<2x64xf32>
    %11 = math.cos %9 : vector<2x64xf32>
    %12 = tpu.concatenate %10, %11 in 1 : vector<2x64xf32>, vector<2x64xf32> -> vector<2x128xf32>
    %c0_4 = arith.constant 0 : index
    %c0_5 = arith.constant 0 : index
    %13 = vector.load %arg2[%c0_4, %c0_5] : memref<2x128xf32, #tpu.memory_space<vmem>>, vector<2x128xf32>
    tpu.vector_store %arg2[%c0_4, %c0_5], %12 {strides = array<i32>} : memref<2x128xf32, #tpu.memory_space<vmem>>, vector<2x128xf32>,
    return
  }
  func.func @transform_0(%arg0: i32) -> (i32, i32) {
    %c0_i32 = arith.constant 0 : i32
    %c0_i32_0 = arith.constant 0 : i32
    return %arg0, %c0_i32 : i32, i32
  }
  func.func @transform_1(%arg0: i32) -> (i32, i32) {
    %c0_i32 = arith.constant 0 : i32
    %c0_i32_0 = arith.constant 0 : i32
    return %arg0, %c0_i32 : i32, i32
  }
}

</mosaic_0001>

<llo_original>
// kernel: tpu_custom_call.1
$region0: #{tpu_custom_call.1}
  #allocation0 [shape = 'u32[]', space=smem, size = 0x4, offset = 0x4, fixed_abs, tag = 'smem constant byte address 0x4 - core index']
  #allocation1 [shape = 'u32[144,128]{1,0:T(1,128)}', space=vmem, size = 0x12000, scoped, tag = 'internal scratch']
  %s0 = inlined_call_operand.hbm [shape: f32[2,16], index: 0, kind: input, shape index: {}]
  %s1 = inlined_call_operand.hbm [shape: f32[2,128], index: 1, kind: output, shape index: {}]
  %s2 = sld [smem:[#allocation0]]
  $region18: #{tpu_custom_call.1} parent=0
    _
  %s4 = ssub.s32 1, %s2
  %s5 = scalar_select 0, %s4, %s2
  $region1: #{tpu_custom_call.1} parent=0
    #allocation2 [shape = 'u8[1024]{0}', space=vmem, size = 0x400, scoped, tag = 'input window, operand 0, single buffered']
    #allocation3 [shape = 's32[1]{0}', space=sflag, size = 0x4, scoped, tag = 'scoped memory for tpu_custom_call.1']
    #allocation4 [shape = 's32[1]{0}', space=sflag, size = 0x4, scoped, tag = 'scoped memory for tpu_custom_call.1']
    #allocation5 [shape = 'u8[1024]{0}', space=vmem, size = 0x400, scoped, tag = 'output window, operand 0, single buffered']
    %6 = vsyncpa [#allocation3], 0
    %7 = vsyncpa [#allocation4], 0
    // Predicated region
    $region2: #{tpu_custom_call.1} parent=1 // pred_check
      _
    $region3: #{tpu_custom_call.1} parent=1 // pred_check_branch
      %9 = sbr.rel (0) target = $region5
    $region4: #{tpu_custom_call.1} parent=1 // pred_region
      %s11 = ssub.s32 32, 32
      %12 = vsyncadd [#allocation3], %s11
      %s14 = sshll.u32 [#allocation2], 4
      %s15 = int_to_ptr.vmem [resolvable:$true] %s14
      %17 = dma.hbm_to_vmem [thread:$0]  %s0, 32, %s15, [#allocation3]
    $region5: #{tpu_custom_call.1} parent=1 // pred_fallthru
      _
    // Predicated region
    $region6: #{tpu_custom_call.1} parent=1 // pred_check
      _
    $region7: #{tpu_custom_call.1} parent=1 // pred_check_branch
      %19 = sbr.rel (0) target = $region9
    $region8: #{tpu_custom_call.1} parent=1 // pred_region
      %20 = dma.done [#allocation3], 32
    $region9: #{tpu_custom_call.1} parent=1 // pred_fallthru
      _
    %v21 = vld [vmem:[#allocation2] sm:$0x3]
    %v22 = vmul.f32 %v21, 2.0
    %v23 = vmul.f32 %v21, 4.0
    %v24 = vmul.f32 %v21, 8.0
    %26 = vrot.lane.b32.xlu0 %v22, 16
    %v27 = vpop.permute.xlu0 %26
    %30 = vrot.lane.b32.xlu0 %v23, 32
    %v31 = vpop.permute.xlu0 %30
    %34 = vrot.lane.b32.xlu0 %v24, 48
    %v35 = vpop.permute.xlu0 %34
    %vm37 = vcmask 130048
    %v38 = vsel %vm37, %v21, %v27
    %vm39 = vcmask 261120
    %v40 = vsel %vm39, %v38, %v31
    %vm41 = vcmask 392192
    %v42 = vsel %vm41, %v40, %v35
    %v43 = vand.u32 2147483647, %v42
    %vm44 = vcmp.le.f32.partialorder %v43, 0.7853982
    %vm45 = vcmp.lt.s32.totalorder %v42, 0
    %v46 = vand.u32 %v42, 2139095040
    %v47 = vshrl.u32 %v46, 23
    %v48 = vsub.s32 %v47, 127
    %v49 = vand.u32 2147483647, %v42
    %v50 = vand.u32 %v49, 8388607
    %v51 = vor.u32 %v50, 8388608
    %v52 = vsub.s32 0, %v51
    %v53 = vadd.s32 %v48, 1
    %vm54 = vcmp.gt.s32.totalorder %v53, 0
    %v55 = vsel %vm54, %v53, 0
    %v56 = vshrl.u32 %v55, 5
    %v57 = vand.u32 %v55, 31
    %v58 = vsub.s32 32, %v57
    %v59 = vshrl.u32 683565275, %v58
    %v60 = vshll.u32 683565275, %v57
    %v61 = vshrl.u32 2475754826, %v58
    %v62 = vor.u32 %v60, %v61
    %v63 = vshll.u32 2475754826, %v57
    %v64 = vshrl.u32 2131351028, %v58
    %v65 = vor.u32 %v63, %v64
    %v66 = vshll.u32 2131351028, %v57
    %v67 = vshrl.u32 2102212464, %v58
    %v68 = vor.u32 %v66, %v67
    %v69 = vshll.u32 2102212464, %v57
    %v70 = vshrl.u32 920167782, %v58
    %v71 = vor.u32 %v69, %v70
    %v72 = vshll.u32 920167782, %v57
    %v73 = vshrl.u32 1326507024, %v58
    %v74 = vor.u32 %v72, %v73
    %vm75 = vcmp.lt.s32.totalorder %v56, 1
    %vm76 = vcmp.lt.s32.totalorder %v56, 2
    %vm77 = vcmp.lt.s32.totalorder %v56, 3
    %vm78 = vcmp.lt.s32.totalorder %v56, 4
    %v79 = vsel %vm75, %v59, %v62
    %v80 = vsel %vm78, %v68, 2102212464
    %v81 = vsel %vm77, %v65, %v80
    %v82 = vsel %vm76, %v79, %v81
    %v83 = vsel %vm75, %v62, %v65
    %v84 = vsel %vm78, %v71, 920167782
    %v85 = vsel %vm77, %v68, %v84
    %v86 = vsel %vm76, %v83, %v85
    %v87 = vsel %vm75, %v65, %v68
    %v88 = vsel %vm78, %v74, 1326507024
    %v89 = vsel %vm77, %v71, %v88
    %v90 = vsel %vm76, %v87, %v89
    %v91 = vshll.u32 %v51, 8
    %v92 = vmul.u32.u64.compose %v91, %v90
    %v93 = vextract.low.u32 %v92
    %v94 = vextract.high.u32 %v92
    %v95 = vmul.u32.u64.compose %v91, %v86
    %v96 = vextract.low.u32 %v95
    %v97 = vextract.high.u32 %v95
    %v98 = vmul.u32 %v91, %v82
    %v99 = vadd.s32 %v94, %v96
    %vm100 = vc.u32 %v94, %v96
    %v101 = vadd.s32 %v97, 1
    %v102 = vsel %vm100, %v101, %v97
    %v103 = vadd.s32 %v98, %v102
    %v104 = vadd.s32 %v103, 536870912
    %v105 = vshrl.u32 %v104, 30
    %v106 = vshll.u32 %v105, 30
    %v107 = vsub.s32 %v103, %v106
    %vm108 = vcmp.lt.s32.totalorder %v107, 0
    %v109 = vsub.s32 0, %v107
    %v110 = vsel %vm108, %v109, %v107
    %v111 = vclz %v110
    %v112 = vsub.s32 %v111, 2
    %vm113 = vcmp.gt.s32.totalorder 0, %v112
    %v114 = vsel %vm113, 0, %v112
    %v115 = vsub.s32 32, %v114
    %v116 = vshll.u32 %v107, %v114
    %v117 = vshrl.u32 %v99, %v115
    %v118 = vor.u32 %v116, %v117
    %v119 = vsub.s32 4294967266, %v114
    %v120 = vadd.s32 %v119, 127
    %v121 = vshll.u32 %v120, 23
    %v122 = vor.u32 4788187, %v121
    %v123 = vand.u32 2147483647, %v122
    %v125 = vcvt.s32.f32 %v118
    %v126 = vmul.f32 %v125, %v123
    %v127 = vxor.u32 %v126, 2147483648
    %v128 = vsel %vm45, %v127, %v126
    %v129 = vsub.s32 4, %v105
    %v130 = vsel %vm45, %v129, %v105
    %v131 = vsel %vm44, %v42, %v128
    %v132 = vsel %vm44, 0, %v130
    %v133 = vcosq.f32.pop %v131
    %v134 = vsinq.f32.pop %v131
    %vm135 = vweird.f32 %v42
    %v136 = vadd.s32 %v132, 3
    %v137 = vand.u32 %v136, 3
    %vm138 = vcmp.lt.s32.totalorder %v137, 2
    %vm139 = vcmp.eq.s32.totalorder %v137, 0
    %v140 = vxor.u32 %v134, 2147483648
    %v141 = vsel %vm139, %v133, %v140
    %vm142 = vcmp.eq.s32.totalorder %v137, 2
    %v143 = vxor.u32 %v133, 2147483648
    %v144 = vsel %vm142, %v143, %v134
    %v145 = vsel %vm138, %v141, %v144
    %v146 = vsel %vm135, nan, %v145
    %v147 = vand.u32 2147483647, %v42
    %vm148 = vcmp.le.f32.partialorder %v147, 0.7853982
    %vm149 = vcmp.lt.s32.totalorder %v42, 0
    %v150 = vand.u32 %v42, 2139095040
    %v151 = vshrl.u32 %v150, 23
    %v152 = vsub.s32 %v151, 127
    %v153 = vand.u32 2147483647, %v42
    %v154 = vand.u32 %v153, 8388607
    %v155 = vor.u32 %v154, 8388608
    %v156 = vsub.s32 0, %v155
    %v157 = vadd.s32 %v152, 1
    %vm158 = vcmp.gt.s32.totalorder %v157, 0
    %v159 = vsel %vm158, %v157, 0
    %v160 = vshrl.u32 %v159, 5
    %v161 = vand.u32 %v159, 31
    %v162 = vsub.s32 32, %v161
    %v163 = vshrl.u32 683565275, %v162
    %v164 = vshll.u32 683565275, %v161
    %v165 = vshrl.u32 2475754826, %v162
    %v166 = vor.u32 %v164, %v165
    %v167 = vshll.u32 2475754826, %v161
    %v168 = vshrl.u32 2131351028, %v162
    %v169 = vor.u32 %v167, %v168
    %v170 = vshll.u32 2131351028, %v161
    %v171 = vshrl.u32 2102212464, %v162
    %v172 = vor.u32 %v170, %v171
    %v173 = vshll.u32 2102212464, %v161
    %v174 = vshrl.u32 920167782, %v162
    %v175 = vor.u32 %v173, %v174
    %v176 = vshll.u32 920167782, %v161
    %v177 = vshrl.u32 1326507024, %v162
    %v178 = vor.u32 %v176, %v177
    %vm179 = vcmp.lt.s32.totalorder %v160, 1
    %vm180 = vcmp.lt.s32.totalorder %v160, 2
    %vm181 = vcmp.lt.s32.totalorder %v160, 3
    %vm182 = vcmp.lt.s32.totalorder %v160, 4
    %v183 = vsel %vm179, %v163, %v166
    %v184 = vsel %vm182, %v172, 2102212464
    %v185 = vsel %vm181, %v169, %v184
    %v186 = vsel %vm180, %v183, %v185
    %v187 = vsel %vm179, %v166, %v169
    %v188 = vsel %vm182, %v175, 920167782
    %v189 = vsel %vm181, %v172, %v188
    %v190 = vsel %vm180, %v187, %v189
    %v191 = vsel %vm179, %v169, %v172
    %v192 = vsel %vm182, %v178, 1326507024
    %v193 = vsel %vm181, %v175, %v192
    %v194 = vsel %vm180, %v191, %v193
    %v195 = vshll.u32 %v155, 8
    %v196 = vmul.u32.u64.compose %v195, %v194
    %v197 = vextract.low.u32 %v196
    %v198 = vextract.high.u32 %v196
    %v199 = vmul.u32.u64.compose %v195, %v190
    %v200 = vextract.low.u32 %v199
    %v201 = vextract.high.u32 %v199
    %v202 = vmul.u32 %v195, %v186
    %v203 = vadd.s32 %v198, %v200
    %vm204 = vc.u32 %v198, %v200
    %v205 = vadd.s32 %v201, 1
    %v206 = vsel %vm204, %v205, %v201
    %v207 = vadd.s32 %v202, %v206
    %v208 = vadd.s32 %v207, 536870912
    %v209 = vshrl.u32 %v208, 30
    %v210 = vshll.u32 %v209, 30
    %v211 = vsub.s32 %v207, %v210
    %vm212 = vcmp.lt.s32.totalorder %v211, 0
    %v213 = vsub.s32 0, %v211
    %v214 = vsel %vm212, %v213, %v211
    %v215 = vclz %v214
    %v216 = vsub.s32 %v215, 2
    %vm217 = vcmp.gt.s32.totalorder 0, %v216
    %v218 = vsel %vm217, 0, %v216
    %v219 = vsub.s32 32, %v218
    %v220 = vshll.u32 %v211, %v218
    %v221 = vshrl.u32 %v203, %v219
    %v222 = vor.u32 %v220, %v221
    %v223 = vsub.s32 4294967266, %v218
    %v224 = vadd.s32 %v223, 127
    %v225 = vshll.u32 %v224, 23
    %v226 = vor.u32 4788187, %v225
    %v227 = vand.u32 2147483647, %v226
    %v229 = vcvt.s32.f32 %v222
    %v230 = vmul.f32 %v229, %v227
    %v231 = vxor.u32 %v230, 2147483648
    %v232 = vsel %vm149, %v231, %v230
    %v233 = vsub.s32 4, %v209
    %v234 = vsel %vm149, %v233, %v209
    %v235 = vsel %vm148, %v42, %v232
    %v236 = vsel %vm148, 0, %v234
    %v237 = vcosq.f32.pop %v235
    %v238 = vsinq.f32.pop %v235
    %vm239 = vweird.f32 %v42
    %v240 = vand.u32 %v236, 3
    %vm241 = vcmp.lt.s32.totalorder %v240, 2
    %vm242 = vcmp.eq.s32.totalorder %v240, 0
    %v243 = vxor.u32 %v238, 2147483648
    %v244 = vsel %vm242, %v237, %v243
    %vm245 = vcmp.eq.s32.totalorder %v240, 2
    %v246 = vxor.u32 %v237, 2147483648
    %v247 = vsel %vm245, %v246, %v238
    %v248 = vsel %vm241, %v244, %v247
    %v249 = vsel %vm239, nan, %v248
    %251 = vrot.lane.b32.xlu0 %v249, 64
    %v252 = vpop.permute.xlu0 %251
    %vm254 = vcmask 523264
    %v255 = vsel %vm254, %v146, %v252
    %256 = vst [vmem:[#allocation5] sm:$0x3] %v255
    // Predicated region
    $region10: #{tpu_custom_call.1} parent=1 // pred_check
      _
    $region11: #{tpu_custom_call.1} parent=1 // pred_check_branch
      %258 = sbr.rel (0) target = $region13
    $region12: #{tpu_custom_call.1} parent=1 // pred_region
      %s260 = ssub.s32 32, 32
      %261 = vsyncadd [#allocation4], %s260
      %s263 = sshll.u32 [#allocation5], 4
      %s264 = int_to_ptr.vmem [resolvable:$true] %s263
      %266 = dma.vmem_to_hbm [thread:$0]  %s264, 32, %s1, [#allocation4]
    $region13: #{tpu_custom_call.1} parent=1 // pred_fallthru
      _
    // Predicated region
    $region14: #{tpu_custom_call.1} parent=1 // pred_check
      _
    $region15: #{tpu_custom_call.1} parent=1 // pred_check_branch
      %268 = sbr.rel (0) target = $region17
    $region16: #{tpu_custom_call.1} parent=1 // pred_region
      %269 = dma.done [#allocation4], 32
    $region17: #{tpu_custom_call.1} parent=1 // pred_fallthru
      _
    %270 = vsyncpa [#allocation3], 1
    %271 = vsyncpa [#allocation4], 1

</llo_original>
